<compile_context>
chip_gen: v5e
topology: v5e:2x2
jax: 0.10.0
libtpu: 0.0.40
codegen_flags: <defaults>
</compile_context>

<pallas_src>
import functools
import math

import jax
import jax.numpy as jnp
from jax.experimental import pallas as pl
from jax.experimental.pallas import tpu as pltpu  # noqa: F401 (CompilerParams if scaled up)

LANE = 128      # lane width: pad OUTPUT feature dims to this (lane-dense intermediates)
SUBLANE = 8     # sublane width: contraction dims only need this alignment


def _round_up(n, m):
    return ((n + m - 1) // m) * m


def _fused_mlp_kernel(x_ref, w_ref, b_ref, o_ref, *, layer_sizes):
    """Fused MLP forward, gridless single program.

      x_ref : (B, D0)                  f32 VMEM (unpadded)
      w_ref : (L, K_pad, N_pad)        bf16 VMEM (pre-transposed, zero-padded)
      b_ref : (L, 1, N_pad)            f32 VMEM (zero-padded)
      o_ref : (B, D_L)                 f32 VMEM (unpadded)

    Intermediates live entirely in vregs.  Padded weight rows/cols and padded
    biases are zero, so padded lanes of every intermediate stay exactly zero.
    """
    dims = layer_sizes
    n_layers = len(dims) - 1

    h = x_ref[...].astype(jnp.float32)            # (B, D0)
    for i in range(n_layers):
        k = dims[i]                               # true contraction size (static)
        w = w_ref[i, :k, :]                       # (k, N_pad) bf16, zero-padded cols
        # MXU gets bf16 x bf16 with f32 accumulation on every generation.
        h = jnp.dot(h[:, :k].astype(jnp.bfloat16), w,
                    preferred_element_type=jnp.float32)
        h = h + b_ref[i]                          # (1, N_pad) f32 broadcast over batch
        if i + 1 < n_layers:                      # ReLU on all but the last layer
            h = jnp.maximum(h, 0.0)               # f32 VPU (v5e-safe)
    o_ref[...] = h[:, :dims[-1]].astype(o_ref.dtype)


def init_mlp_params(key, layer_sizes):
    """xavier_uniform_ weights (matching weights_init) and PyTorch-default
    uniform biases, per layer.  Weights in PyTorch layout (out, in), fp32."""
    params = []
    for i in range(len(layer_sizes) - 1):
        fan_in, fan_out = layer_sizes[i], layer_sizes[i + 1]
        key, kw, kb = jax.random.split(key, 3)
        bound_w = math.sqrt(6.0 / (fan_in + fan_out))
        w = jax.random.uniform(kw, (fan_out, fan_in), minval=-bound_w,
                               maxval=bound_w, dtype=jnp.float32)
        bound_b = 1.0 / math.sqrt(fan_in)
        b = jax.random.uniform(kb, (fan_out,), minval=-bound_b, maxval=bound_b,
                               dtype=jnp.float32)
        params.append((w, b))
    return params


def pack_params(params):
    """One-time pack: transpose every weight to (in, out), cast to bf16, stack
    into a single (L, K_pad, N_pad) array; stack biases (f32) likewise.
    K_pad = max in-feature rounded to 8 (sublane);  N_pad = max out-feature
    rounded to 128 (lane)."""
    n_layers = len(params)
    k_pad = _round_up(max(w.shape[1] for w, _ in params), SUBLANE)
    n_pad = _round_up(max(w.shape[0] for w, _ in params), LANE)
    w_stack = jnp.zeros((n_layers, k_pad, n_pad), jnp.bfloat16)
    b_stack = jnp.zeros((n_layers, 1, n_pad), jnp.float32)
    for i, (w, b) in enumerate(params):
        out_f, in_f = w.shape
        w_stack = w_stack.at[i, :in_f, :out_f].set(w.T.astype(jnp.bfloat16))
        b_stack = b_stack.at[i, 0, :out_f].set(b)
    return w_stack, b_stack


@functools.partial(jax.jit, static_argnames=("layer_sizes",))
def mlp_forward(x, w_stack, b_stack, *, layer_sizes):
    """Fused forward pass: one pallas_call for the whole MLP, inside jit.
    No wrapper-side padding or slicing."""
    B, in_f = x.shape
    assert in_f == layer_sizes[0]
    n_layers = len(layer_sizes) - 1
    out_f = layer_sizes[-1]

    flops = 2 * B * sum(layer_sizes[i] * layer_sizes[i + 1] for i in range(n_layers))
    bytes_accessed = (x.size * x.dtype.itemsize
                      + w_stack.size * w_stack.dtype.itemsize
                      + b_stack.size * b_stack.dtype.itemsize
                      + B * out_f * x.dtype.itemsize)

    kernel = functools.partial(_fused_mlp_kernel, layer_sizes=tuple(layer_sizes))

    # Gridless single program: everything fits in VMEM at these shapes.
    # TODO(synk): when batch/hidden scale up, add a leading batch grid axis
    # marked "parallel" (2-TC sharding on v7x) with constant-index weight
    # BlockSpecs so weights stay resident across steps, and re-derive tile
    # sizes against v7x's 64 MiB per-TC VMEM (vs 128 MiB on v5e/v6e).
    return pl.pallas_call(
        kernel,
        out_shape=jax.ShapeDtypeStruct((B, out_f), x.dtype),
        in_specs=[
            pl.BlockSpec(x.shape, lambda: (0, 0)),
            pl.BlockSpec(w_stack.shape, lambda: (0, 0, 0)),
            pl.BlockSpec(b_stack.shape, lambda: (0, 0, 0)),
        ],
        out_specs=pl.BlockSpec((B, out_f), lambda: (0, 0)),
        cost_estimate=pl.CostEstimate(flops=flops, transcendentals=0,
                                      bytes_accessed=bytes_accessed),
    )(x, w_stack, b_stack)


def mlp_reference_fp32(x, params):
    """Pure-fp32 reference (original PyTorch semantics, PyTorch-layout weights)."""
    n_layers = len(params)
    for i, (w, b) in enumerate(params):
        x = x @ w.T + b
        if i + 1 < n_layers:
            x = jnp.maximum(x, 0.0)
    return x


def mlp_reference_bf16(x, params):
    """Reference matching the kernel's numerics: bf16 operands, f32 accumulation."""
    n_layers = len(params)
    h = x.astype(jnp.float32)
    for i, (w, b) in enumerate(params):
        lhs = h.astype(jnp.bfloat16).astype(jnp.float32)
        rhs = w.T.astype(jnp.bfloat16).astype(jnp.float32)
        h = jnp.dot(lhs, rhs, precision=jax.lax.Precision.HIGHEST) + b
        if i + 1 < n_layers:
            h = jnp.maximum(h, 0.0)
    return h


if __name__ == "__main__":
    key = jax.random.PRNGKey(0)
    layer_sizes = (32, 64, 48, 16)
    batch = 8

    kx, kp = jax.random.split(key)
    x = jax.random.normal(kx, (batch, layer_sizes[0]), dtype=jnp.float32)
    params = init_mlp_params(kp, layer_sizes)

    # One-time packing: transpose + bf16 cast + stack (kept across forwards).
    w_stack, b_stack = pack_params(params)

    out = mlp_forward(x, w_stack, b_stack, layer_sizes=layer_sizes)
    out = jax.block_until_ready(out)

    assert out.shape == (batch, layer_sizes[-1])

    # Strict check against a reference with identical bf16-weight numerics.
    ref_bf16 = mlp_reference_bf16(x, params)
    assert jnp.allclose(out, ref_bf16, atol=2e-3, rtol=2e-3), \
        "mismatch vs bf16-quantized reference"

    # Loose check against the original fp32 PyTorch semantics (bf16 weight
    # quantization is the only difference).
    ref_fp32 = mlp_reference_fp32(x, params)
    assert jnp.allclose(out, ref_fp32, atol=1.5e-1, rtol=1e-1), \
        "mismatch vs fp32 reference"

    print("KERNEL_OK")
</pallas_src>

<mosaic_0001>
module attributes {stable_mosaic.version = 11 : i64} {
  func.func @_fused_mlp_kernel(%arg0: memref<8x32xf32, #tpu.memory_space<vmem>>, %arg1: memref<3x64x128xbf16, #tpu.memory_space<vmem>>, %arg2: memref<3x1x128xf32, #tpu.memory_space<vmem>>, %arg3: memref<8x16xf32, #tpu.memory_space<vmem>>) attributes {dimension_semantics = [], scalar_prefetch = 0 : i64, scratch_operands = 0 : i64, tpu.core_type = #tpu.core_type<tc>} {
    %c0 = arith.constant 0 : index
    %c0_0 = arith.constant 0 : index
    %0 = vector.load %arg0[%c0, %c0_0] : memref<8x32xf32, #tpu.memory_space<vmem>>, vector<8x32xf32>
    %c0_1 = arith.constant 0 : index
    %c0_2 = arith.constant 0 : index
    %c0_3 = arith.constant 0 : index
    %1 = vector.load %arg1[%c0_1, %c0_2, %c0_3] : memref<3x64x128xbf16, #tpu.memory_space<vmem>>, vector<1x32x128xbf16>
    %2 = vector.shape_cast %1 : vector<1x32x128xbf16> to vector<32x128xbf16>
    %3 = arith.truncf %0 : vector<8x32xf32> to vector<8x32xbf16>
    %cst = arith.constant dense<0.000000e+00> : vector<8x128xf32>
    %4 = tpu.matmul %3, %2, %cst {dimension_numbers = #tpu.dot_dimension_numbers<[1], [0], [0], [1], [0, 0, 1, 1], [], []>} : vector<8x32xbf16>, vector<32x128xbf16>, vector<8x128xf32> -> vector<8x128xf32>
    %c0_4 = arith.constant 0 : index
    %c0_5 = arith.constant 0 : index
    %c0_6 = arith.constant 0 : index
    %5 = vector.load %arg2[%c0_4, %c0_5, %c0_6] : memref<3x1x128xf32, #tpu.memory_space<vmem>>, vector<1x1x128xf32>
    %6 = vector.shape_cast %5 : vector<1x1x128xf32> to vector<1x128xf32>
    %7 = vector.broadcast %6 : vector<1x128xf32> to vector<8x128xf32>
    %8 = arith.addf %4, %7 : vector<8x128xf32>
    %cst_7 = arith.constant 0.000000e+00 : f32
    %9 = vector.broadcast %cst_7 : f32 to vector<8x128xf32>
    %10 = arith.maximumf %8, %9 : vector<8x128xf32>
    %c1 = arith.constant 1 : index
    %c0_8 = arith.constant 0 : index
    %c0_9 = arith.constant 0 : index
    %11 = vector.load %arg1[%c1, %c0_8, %c0_9] : memref<3x64x128xbf16, #tpu.memory_space<vmem>>, vector<1x64x128xbf16>
    %12 = vector.shape_cast %11 : vector<1x64x128xbf16> to vector<64x128xbf16>
    %13 = vector.extract_strided_slice %10 {offsets = [0, 0], sizes = [8, 64], strides = [1, 1]} : vector<8x128xf32> to vector<8x64xf32>
    %14 = arith.truncf %13 : vector<8x64xf32> to vector<8x64xbf16>
    %cst_10 = arith.constant dense<0.000000e+00> : vector<8x128xf32>
    %15 = tpu.matmul %14, %12, %cst_10 {dimension_numbers = #tpu.dot_dimension_numbers<[1], [0], [0], [1], [0, 0, 1, 1], [], []>} : vector<8x64xbf16>, vector<64x128xbf16>, vector<8x128xf32> -> vector<8x128xf32>
    %c1_11 = arith.constant 1 : index
    %c0_12 = arith.constant 0 : index
    %c0_13 = arith.constant 0 : index
    %16 = vector.load %arg2[%c1_11, %c0_12, %c0_13] : memref<3x1x128xf32, #tpu.memory_space<vmem>>, vector<1x1x128xf32>
    %17 = vector.shape_cast %16 : vector<1x1x128xf32> to vector<1x128xf32>
    %18 = vector.broadcast %17 : vector<1x128xf32> to vector<8x128xf32>
    %19 = arith.addf %15, %18 : vector<8x128xf32>
    %cst_14 = arith.constant 0.000000e+00 : f32
    %20 = vector.broadcast %cst_14 : f32 to vector<8x128xf32>
    %21 = arith.maximumf %19, %20 : vector<8x128xf32>
    %c2 = arith.constant 2 : index
    %c0_15 = arith.constant 0 : index
    %c0_16 = arith.constant 0 : index
    %22 = vector.load %arg1[%c2, %c0_15, %c0_16] : memref<3x64x128xbf16, #tpu.memory_space<vmem>>, vector<1x48x128xbf16>
    %23 = vector.shape_cast %22 : vector<1x48x128xbf16> to vector<48x128xbf16>
    %24 = vector.extract_strided_slice %21 {offsets = [0, 0], sizes = [8, 48], strides = [1, 1]} : vector<8x128xf32> to vector<8x48xf32>
    %25 = arith.truncf %24 : vector<8x48xf32> to vector<8x48xbf16>
    %cst_17 = arith.constant dense<0.000000e+00> : vector<8x128xf32>
    %26 = tpu.matmul %25, %23, %cst_17 {dimension_numbers = #tpu.dot_dimension_numbers<[1], [0], [0], [1], [0, 0, 1, 1], [], []>} : vector<8x48xbf16>, vector<48x128xbf16>, vector<8x128xf32> -> vector<8x128xf32>
    %c2_18 = arith.constant 2 : index
    %c0_19 = arith.constant 0 : index
    %c0_20 = arith.constant 0 : index
    %27 = vector.load %arg2[%c2_18, %c0_19, %c0_20] : memref<3x1x128xf32, #tpu.memory_space<vmem>>, vector<1x1x128xf32>
    %28 = vector.shape_cast %27 : vector<1x1x128xf32> to vector<1x128xf32>
    %29 = vector.broadcast %28 : vector<1x128xf32> to vector<8x128xf32>
    %30 = arith.addf %26, %29 : vector<8x128xf32>
    %31 = vector.extract_strided_slice %30 {offsets = [0, 0], sizes = [8, 16], strides = [1, 1]} : vector<8x128xf32> to vector<8x16xf32>
    %c0_21 = arith.constant 0 : index
    %c0_22 = arith.constant 0 : index
    %32 = vector.load %arg3[%c0_21, %c0_22] : memref<8x16xf32, #tpu.memory_space<vmem>>, vector<8x16xf32>
    tpu.vector_store %arg3[%c0_21, %c0_22], %31 {strides = array<i32>} : memref<8x16xf32, #tpu.memory_space<vmem>>, vector<8x16xf32>,
    return
  }
}

</mosaic_0001>

<llo_original>
// kernel: mlp_forward.1
$region0: #{mlp_forward.1}
  #allocation0 [shape = 'u32[]', space=smem, size = 0x4, offset = 0x4, fixed_abs, tag = 'smem constant byte address 0x4 - core index']
  #allocation1 [shape = 'u32[72,128]{1,0:T(1,128)}', space=vmem, size = 0x9000, scoped, tag = 'internal scratch']
  %s0 = inlined_call_operand.hbm [shape: f32[8,32], index: 0, kind: input, shape index: {}]
  %s1 = inlined_call_operand.hbm [shape: bf16[3,64,128], index: 1, kind: input, shape index: {}]
  %s2 = inlined_call_operand.hbm [shape: f32[3,1,128], index: 2, kind: input, shape index: {}]
  %s3 = inlined_call_operand.hbm [shape: f32[8,16], index: 3, kind: output, shape index: {}]
  %s4 = sld [smem:[#allocation0]]
  $region34: #{mlp_forward.1} parent=0
    _
  %s6 = ssub.s32 1, %s4
  %s7 = scalar_select 0, %s6, %s4
  $region1: #{mlp_forward.1} parent=0
    #allocation2 [shape = 'u8[4096]{0}', space=vmem, size = 0x1000, scoped, tag = 'input window, operand 0, single buffered']
    #allocation3 [shape = 's32[1]{0}', space=sflag, size = 0x4, scoped, tag = 'scoped memory for mlp_forward.1']
    #allocation4 [shape = 's32[1]{0}', space=sflag, size = 0x4, scoped, tag = 'scoped memory for mlp_forward.1']
    #allocation5 [shape = 'u8[49152]{0}', space=vmem, size = 0xc000, scoped, tag = 'input window, operand 1, single buffered']
    #allocation6 [shape = 's32[1]{0}', space=sflag, size = 0x4, scoped, tag = 'scoped memory for mlp_forward.1']
    #allocation7 [shape = 'u8[1536]{0}', space=vmem, size = 0x800, scoped, tag = 'input window, operand 2, single buffered']
    #allocation8 [shape = 'u8[4096]{0}', space=vmem, size = 0x1000, scoped, tag = 'output window, operand 0, single buffered']
    %8 = vsyncpa [#allocation3], 0
    %9 = vsyncpa [#allocation6], 0
    %10 = vsyncpa [#allocation4], 0
    // Predicated region
    $region2: #{mlp_forward.1} parent=1 // pred_check
      _
    $region3: #{mlp_forward.1} parent=1 // pred_check_branch
      %12 = sbr.rel (0) target = $region5
    $region4: #{mlp_forward.1} parent=1 // pred_region
      %14 = vsyncadd [#allocation3], 0
      %s16 = sshll.u32 %s0, 4
      %s17 = int_to_ptr.hbm [resolvable:$true] %s16
      %s18 = sshll.u32 [#allocation2], 4
      %s19 = int_to_ptr.vmem [resolvable:$true] %s18
      %21 = dma.hbm_to_vmem [thread:$0]  %s17, 128, %s19, [#allocation3]
    $region5: #{mlp_forward.1} parent=1 // pred_fallthru
      _
    // Predicated region
    $region6: #{mlp_forward.1} parent=1 // pred_check
      _
    $region7: #{mlp_forward.1} parent=1 // pred_check_branch
      %23 = sbr.rel (0) target = $region9
    $region8: #{mlp_forward.1} parent=1 // pred_region
      %25 = vsyncadd [#allocation6], 0
      %s26 = sshll.u32 %s1, 4
      %s27 = int_to_ptr.hbm [resolvable:$true] %s26
      %s28 = sshll.u32 [#allocation5], 4
      %s29 = int_to_ptr.vmem [resolvable:$true] %s28
      %34 = dma.hbm_to_vmem [thread:$0]  %s27, 1536, %s29, [#allocation6], 64, 64, 4
    $region9: #{mlp_forward.1} parent=1 // pred_fallthru
      _
    // Predicated region
    $region10: #{mlp_forward.1} parent=1 // pred_check
      _
    $region11: #{mlp_forward.1} parent=1 // pred_check_branch
      %36 = sbr.rel (0) target = $region13
    $region12: #{mlp_forward.1} parent=1 // pred_region
      %38 = vsyncadd [#allocation6], 0
      %s39 = sshll.u32 %s2, 4
      %s40 = int_to_ptr.hbm [resolvable:$true] %s39
      %s41 = sshll.u32 [#allocation7], 4
      %s42 = int_to_ptr.vmem [resolvable:$true] %s41
      %47 = dma.hbm_to_vmem [thread:$0]  %s40, 48, %s42, [#allocation6], 16, 16, 1
    $region13: #{mlp_forward.1} parent=1 // pred_fallthru
      _
    // Predicated region
    $region14: #{mlp_forward.1} parent=1 // pred_check
      _
    $region15: #{mlp_forward.1} parent=1 // pred_check_branch
      %49 = sbr.rel (0) target = $region17
    $region16: #{mlp_forward.1} parent=1 // pred_region
      %51 = dma.done [#allocation3], 128
    $region17: #{mlp_forward.1} parent=1 // pred_fallthru
      _
    // Predicated region
    $region18: #{mlp_forward.1} parent=1 // pred_check
      _
    $region19: #{mlp_forward.1} parent=1 // pred_check_branch
      %53 = sbr.rel (0) target = $region21
    $region20: #{mlp_forward.1} parent=1 // pred_region
      %55 = dma.done [#allocation6], 1536
    $region21: #{mlp_forward.1} parent=1 // pred_fallthru
      _
    // Predicated region
    $region22: #{mlp_forward.1} parent=1 // pred_check
      _
    $region23: #{mlp_forward.1} parent=1 // pred_check_branch
      %57 = sbr.rel (0) target = $region25
    $region24: #{mlp_forward.1} parent=1 // pred_region
      %59 = dma.done [#allocation6], 48
    $region25: #{mlp_forward.1} parent=1 // pred_fallthru
      _
    %v61 = vld [vmem:[#allocation2] sm:$0xff]
    %v62 = vld [vmem:[#allocation5] sm:$0xf]
    %v63 = vld [vmem:[#allocation5 + $0x4] sm:$0xf]
    %v64 = vld [vmem:[#allocation5 + $0x8] sm:$0xf]
    %v65 = vld [vmem:[#allocation5 + $0xc] sm:$0xf]
    %v66 = vpack.c.bf16 %v61, %v61
    %v67 = vld [vmem:[#allocation7] sm:$0x1]
    %v69 = vperm.slane %v67, 0
    %v75 = vunpack.c.l.b16 %v62
    %v76 = vunpack.c.l.b16 %v63
    %v77 = vunpack.c.l.b16 %v64
    %v78 = vunpack.c.l.b16 %v65
    %v79 = vpack.c.b16 %v76, %v75
    %v80 = vpack.c.b16 %v78, %v77
    %vm83 = vcmask 261120
    %v85 = vsel %vm83, %v66, 0
    %87 = vmatpush.bf16.msra.mxu0 0
    %88 = vmatpush.bf16.msra.mxu0 0
    %89 = vmatpush.bf16.msra.mxu0 0
    %90 = vmatpush.bf16.msra.mxu0 0
    %91 = vmatpush.bf16.msra.mxu0 0
    %92 = vmatpush.bf16.msra.mxu0 0
    %93 = vmatpush.bf16.msra.mxu0 %v80
    %94 = vmatpush.bf16.msra.mxu0 %v79
    %95 = vmatmul.bf16.gmra.mxu0 %v85
    %v96 = vpop.f32.mrf.mxu0
    %v97 = vadd.f32 %v69, %v96
    %v98 = vpop.f32.mrf.mxu0
    %99 = vdwg.mxu0
    %v100 = vmax.f32 %v97, 0.0
    %s101 = scalar_lea.vmem [#allocation5], 32
    %v102 = vld [vmem:[%s101] sm:$0xf]
    %v103 = vld [vmem:[%s101 + $0x4] sm:$0xf]
    %v104 = vld [vmem:[%s101 + $0x8] sm:$0xf]
    %v105 = vld [vmem:[%s101 + $0xc] sm:$0xf]
    %v106 = vld [vmem:[%s101 + $0x10] sm:$0xf]
    %v107 = vld [vmem:[%s101 + $0x14] sm:$0xf]
    %v108 = vld [vmem:[%s101 + $0x18] sm:$0xf]
    %v109 = vld [vmem:[%s101 + $0x1c] sm:$0xf]
    %v110 = vpack.c.bf16 %v100, %v100
    %s111 = scalar_lea.vmem [#allocation7], 1
    %v112 = vld [vmem:[%s111] sm:$0x1]
    %v114 = vperm.slane %v112, 0
    %v124 = vunpack.c.l.b16 %v102
    %v125 = vunpack.c.l.b16 %v103
    %v126 = vunpack.c.l.b16 %v104
    %v127 = vunpack.c.l.b16 %v105
    %v128 = vunpack.c.l.b16 %v106
    %v129 = vunpack.c.l.b16 %v107
    %v130 = vunpack.c.l.b16 %v108
    %v131 = vunpack.c.l.b16 %v109
    %v132 = vpack.c.b16 %v125, %v124
    %v133 = vpack.c.b16 %v127, %v126
    %v134 = vpack.c.b16 %v129, %v128
    %v135 = vpack.c.b16 %v131, %v130
    %vm140 = vcmask 523264
    %v142 = vsel %vm140, %v110, 0
    %144 = vmatpush.bf16.msra.mxu0 0
    %145 = vmatpush.bf16.msra.mxu0 0
    %146 = vmatpush.bf16.msra.mxu0 0
    %147 = vmatpush.bf16.msra.mxu0 0
    %148 = vmatpush.bf16.msra.mxu0 %v135
    %149 = vmatpush.bf16.msra.mxu0 %v134
    %150 = vmatpush.bf16.msra.mxu0 %v133
    %151 = vmatpush.bf16.msra.mxu0 %v132
    %152 = vmatmul.bf16.gmra.mxu0 %v142
    %v153 = vpop.f32.mrf.mxu0
    %v154 = vadd.f32 %v114, %v153
    %v155 = vpop.f32.mrf.mxu0
    %156 = vdwg.mxu0
    %v157 = vmax.f32 %v154, 0.0
    %s158 = scalar_lea.vmem [#allocation5], 64
    %v159 = vld [vmem:[%s158] sm:$0xf]
    %v160 = vld [vmem:[%s158 + $0x4] sm:$0xf]
    %v161 = vld [vmem:[%s158 + $0x8] sm:$0xf]
    %v162 = vld [vmem:[%s158 + $0xc] sm:$0xf]
    %v163 = vld [vmem:[%s158 + $0x10] sm:$0xf]
    %v164 = vld [vmem:[%s158 + $0x14] sm:$0xf]
    %v165 = vpack.c.bf16 %v157, %v157
    %s166 = scalar_lea.vmem [#allocation7], 2
    %v167 = vld [vmem:[%s166] sm:$0x1]
    %v169 = vperm.slane %v167, 0
    %v177 = vunpack.c.l.b16 %v159
    %v178 = vunpack.c.l.b16 %v160
    %v179 = vunpack.c.l.b16 %v161
    %v180 = vunpack.c.l.b16 %v162
    %v181 = vunpack.c.l.b16 %v163
    %v182 = vunpack.c.l.b16 %v164
    %v183 = vpack.c.b16 %v178, %v177
    %v184 = vpack.c.b16 %v180, %v179
    %v185 = vpack.c.b16 %v182, %v181
    %vm189 = vcmask 392192
    %v191 = vsel %vm189, %v165, 0
    %193 = vmatpush.bf16.msra.mxu0 0
    %194 = vmatpush.bf16.msra.mxu0 0
    %195 = vmatpush.bf16.msra.mxu0 0
    %196 = vmatpush.bf16.msra.mxu0 0
    %197 = vmatpush.bf16.msra.mxu0 0
    %198 = vmatpush.bf16.msra.mxu0 %v185
    %199 = vmatpush.bf16.msra.mxu0 %v184
    %200 = vmatpush.bf16.msra.mxu0 %v183
    %201 = vmatmul.bf16.gmra.mxu0 %v191
    %v202 = vpop.f32.mrf.mxu0
    %v203 = vadd.f32 %v169, %v202
    %v204 = vpop.f32.mrf.mxu0
    %205 = vdwg.mxu0
    %vm206 = vcmask 130048
    %207 = vst.msk [vmem:[#allocation8] sm:$0xff] %vm206, %v203
    // Predicated region
    $region26: #{mlp_forward.1} parent=1 // pred_check
      _
    $region27: #{mlp_forward.1} parent=1 // pred_check_branch
      %209 = sbr.rel (0) target = $region29
    $region28: #{mlp_forward.1} parent=1 // pred_region
      %211 = vsyncadd [#allocation4], 0
      %s213 = sshll.u32 [#allocation8], 4
      %s214 = int_to_ptr.vmem [resolvable:$true] %s213
      %s215 = sshll.u32 %s3, 4
      %s216 = int_to_ptr.hbm [resolvable:$true] %s215
      %218 = dma.vmem_to_hbm [thread:$0]  %s214, 128, %s216, [#allocation4]
    $region29: #{mlp_forward.1} parent=1 // pred_fallthru
      _
    // Predicated region
    $region30: #{mlp_forward.1} parent=1 // pred_check
      _
    $region31: #{mlp_forward.1} parent=1 // pred_check_branch
      %220 = sbr.rel (0) target = $region33
    $region32: #{mlp_forward.1} parent=1 // pred_region
      %222 = dma.done [#allocation4], 128
    $region33: #{mlp_forward.1} parent=1 // pred_fallthru
      _
    %223 = vsyncpa [#allocation3], 1
    %224 = vsyncpa [#allocation6], 1
    %225 = vsyncpa [#allocation4], 1

</llo_original>
